<compile_context>
chip_gen: v7x
topology: tpu7x:2x2x1
jax: 0.10.0
libtpu: 0.0.40
codegen_flags: <defaults>
</compile_context>

<pallas_src>
import math

import jax
import jax.numpy as jnp
from jax.experimental import pallas as pl
from jax.experimental.pallas import tpu as pltpu


def make_positional_encoding_table(d_model: int, max_len: int = 100) -> jnp.ndarray:
    """Deterministic sinusoidal table, identical to the PyTorch __init__ (fp32)."""
    position = jnp.arange(0, max_len, dtype=jnp.float32)[:, None]           # (max_len, 1)
    div_term = jnp.exp(
        jnp.arange(0, d_model, 2, dtype=jnp.float32) * (-math.log(10000.0) / d_model)
    )                                                                        # (ceil(d/2),)
    sin_part = jnp.sin(position * div_term)
    cos_part = jnp.cos(position * div_term)
    pe = jnp.zeros((max_len, d_model), dtype=jnp.float32)
    pe = pe.at[:, 0::2].set(sin_part)
    pe = pe.at[:, 1::2].set(cos_part[:, : d_model // 2])                     # handles odd d_model
    return pe


def _tpu_generation() -> int:
    """Rough TPU generation (5 / 6 / 7) from device_kind; 0 if unknown."""
    try:
        kind = jax.devices()[0].device_kind.lower()
    except Exception:
        return 0
    if "7" in kind:
        return 7
    if "v6" in kind:
        return 6
    if "v5" in kind:
        return 5
    return 0


def _pick_tiles(B: int, F: int, itemsize: int, target_bytes: int,
                prefer_multi_step: bool):
    """Pick (row_tile, feature_tile) for the flattened (B, F) view.

    Row tile is a multiple of the packed-sublane height for the dtype
    (8 rows f32, 16 bf16, 32 int8/fp8), falling back to the full extent only
    when B is smaller. Feature tile is a lane-dense multiple of 128 capped by
    `target_bytes`; ragged edge blocks are handled by cdiv grids, so the block
    never degenerates into the whole array for awkward shapes.
    """
    cdiv = lambda a, b: -(-a // b)
    min_tb = max(8, 32 // max(itemsize, 1))     # dtype-aware sublane packing

    # Feature (lane) tile.
    if F < 128:
        tf = F                                  # full extent (< one lane tile)
    else:
        budget_tf = max(128, (target_bytes // (min_tb * itemsize)) // 128 * 128)
        tf = min(cdiv(F, 128) * 128, budget_tf)

    # Row (sublane) tile.
    if B < min_tb:
        tb = B                                  # full extent (layout rule OK)
    else:
        tb = min_tb
        while 2 * tb <= B and 2 * tb * tf * itemsize <= target_bytes:
            tb *= 2                             # stays a multiple of min_tb

    # v7x: avoid a single-step grid for sizeable arrays (keep both TCs busy).
    if (prefer_multi_step and cdiv(B, tb) * cdiv(F, tf) == 1
            and B * F * itemsize > (1 << 20)):
        if tf >= 256 and tf % 256 == 0:
            tf //= 2
        elif tb > min_tb:
            tb //= 2

    return tb, tf


def _pe_add_kernel(x_ref, pe_ref, o_ref):
    # x_ref / o_ref: (tb, tf) tile of the flattened (B, S*D) activations.
    # pe_ref:        (1, tf) tile of the flattened table, broadcast over rows.
    o_ref[...] = x_ref[...] + pe_ref[...]


def positional_encoding_forward_flat(x: jnp.ndarray, pe_flat: jnp.ndarray,
                                     *, donate_x: bool = False) -> jnp.ndarray:
    """x: [B, S, D]; pe_flat: [1, S*D] (already sliced to S and cast to x.dtype)."""
    B, S, D = x.shape
    F = S * D
    assert pe_flat.shape == (1, F), f"pe_flat shape {pe_flat.shape} != (1, {F})"
    assert pe_flat.dtype == x.dtype, "pe_flat must be pre-cast to x.dtype"

    x2 = x.reshape(B, F)
    itemsize = jnp.dtype(x.dtype).itemsize

    gen = _tpu_generation()
    target_bytes = {5: 2 << 20, 6: 4 << 20, 7: 8 << 20}.get(gen, 2 << 20)
    tb, tf = _pick_tiles(B, F, itemsize, target_bytes, prefer_multi_step=(gen == 7))

    grid_f = pl.cdiv(F, tf)
    grid_b = pl.cdiv(B, tb)

    # Double-buffered x + out blocks, double-buffered (1, tf) pe tile, + margin.
    vmem_needed = 4 * tb * tf * itemsize + 2 * tf * itemsize + (2 << 20)
    vmem_limit = int(min(max(vmem_needed, 16 << 20), 48 << 20))

    out2 = pl.pallas_call(
        _pe_add_kernel,
        out_shape=jax.ShapeDtypeStruct((B, F), x.dtype),
        grid_spec=pl.GridSpec(
            # Batch axis innermost: pe's block index (0, j) is constant across
            # consecutive steps, so its tile stays VMEM-resident (no re-DMA).
            grid=(grid_f, grid_b),
            in_specs=[
                pl.BlockSpec((tb, tf), lambda j, i: (i, j)),   # x tile
                pl.BlockSpec((1, tf), lambda j, i: (0, j)),    # pe (batch-invariant)
            ],
            out_specs=pl.BlockSpec((tb, tf), lambda j, i: (i, j)),
        ),
        compiler_params=pltpu.CompilerParams(
            dimension_semantics=("parallel", "parallel"),
            vmem_limit_bytes=vmem_limit,
        ),
        input_output_aliases=({0: 0} if donate_x else {}),
    )(x2, pe_flat)

    return out2.reshape(B, S, D)


class PositionalEncoding:
    """Pallas-backed equivalent of the PyTorch module's forward()."""

    def __init__(self, d_model: int, max_len: int = 100):
        self.d_model = d_model
        self.max_len = max_len
        self.pe = make_positional_encoding_table(d_model, max_len)
        self._pe_flat_cache = {}   # (seq_len, dtype name) -> (1, S*D) slab

    def _pe_flat(self, seq_len: int, dtype) -> jnp.ndarray:
        # Hoisted out of the per-call path: slice + flatten + cast once per
        # (seq_len, dtype) instead of re-running the XLA slice every forward.
        key = (seq_len, jnp.dtype(dtype).name)
        slab = self._pe_flat_cache.get(key)
        if slab is None:
            slab = jnp.asarray(
                self.pe[:seq_len, :].reshape(1, seq_len * self.d_model), dtype=dtype)
            slab = jax.block_until_ready(slab)
            self._pe_flat_cache[key] = slab
        return slab

    def __call__(self, x: jnp.ndarray, *, donate_x: bool = False) -> jnp.ndarray:
        B, S, D = x.shape
        assert D == self.d_model, f"d_model mismatch: x has {D}, pe has {self.d_model}"
        assert S <= self.max_len, f"sequence length {S} exceeds max_len {self.max_len}"
        # Note: pe is cast to x.dtype before the add (slightly different from an
        # fp32 add followed by downcast for bf16 inputs); identical for fp32.
        return positional_encoding_forward_flat(
            x, self._pe_flat(S, x.dtype), donate_x=donate_x)


if __name__ == "__main__":
    # Small shapes consistent with the module: batch=2, seq=8, d_model=32.
    B, S, D = 2, 8, 32
    max_len = 100

    key = jax.random.PRNGKey(0)
    x = jax.random.normal(key, (B, S, D), dtype=jnp.float32)

    module = PositionalEncoding(D, max_len)
    out = jax.block_until_ready(module(x))

    # Reference check (pure JAX) against the PyTorch forward semantics.
    ref = x + module.pe[:S, :]
    assert out.shape == (B, S, D)
    assert jnp.allclose(out, ref, atol=1e-6), "mismatch vs reference"

    print("KERNEL_OK")
</pallas_src>

<mosaic_0001>
module attributes {stable_mosaic.version = 11 : i64} {
  func.func @_pe_add_kernel(%arg0: i32, %arg1: i32, %arg2: memref<2x256xf32, #tpu.memory_space<vmem>>, %arg3: memref<1x256xf32, #tpu.memory_space<vmem>>, %arg4: memref<2x256xf32, #tpu.memory_space<vmem>>) attributes {dimension_semantics = [#tpu.dimension_semantics<parallel>, #tpu.dimension_semantics<parallel>], iteration_bounds = array<i64: 1, 1>, scalar_prefetch = 0 : i64, scratch_operands = 0 : i64, tpu.core_type = #tpu.core_type<tc>, window_params = [{transform_indices = @transform_0, window_bounds = array<i64: 2, 256>}, {transform_indices = @transform_1, window_bounds = array<i64: 1, 256>}, {transform_indices = @transform_2, window_bounds = array<i64: 2, 256>}]} {
    %c0 = arith.constant 0 : index
    %c0_0 = arith.constant 0 : index
    %0 = vector.load %arg2[%c0, %c0_0] : memref<2x256xf32, #tpu.memory_space<vmem>>, vector<2x256xf32>
    %c0_1 = arith.constant 0 : index
    %c0_2 = arith.constant 0 : index
    %1 = vector.load %arg3[%c0_1, %c0_2] : memref<1x256xf32, #tpu.memory_space<vmem>>, vector<1x256xf32>
    %2 = vector.broadcast %1 : vector<1x256xf32> to vector<2x256xf32>
    %3 = arith.addf %0, %2 : vector<2x256xf32>
    %c0_3 = arith.constant 0 : index
    %c0_4 = arith.constant 0 : index
    %4 = vector.load %arg4[%c0_3, %c0_4] : memref<2x256xf32, #tpu.memory_space<vmem>>, vector<2x256xf32>
    tpu.vector_store %arg4[%c0_3, %c0_4], %3 {strides = array<i32>} : memref<2x256xf32, #tpu.memory_space<vmem>>, vector<2x256xf32>,
    return
  }
  func.func @transform_0(%arg0: i32, %arg1: i32) -> (i32, i32) {
    %c0_i32 = arith.constant 0 : i32
    return %arg1, %arg0 : i32, i32
  }
  func.func @transform_1(%arg0: i32, %arg1: i32) -> (i32, i32) {
    %c0_i32 = arith.constant 0 : i32
    %c0_i32_0 = arith.constant 0 : i32
    return %c0_i32, %arg0 : i32, i32
  }
  func.func @transform_2(%arg0: i32, %arg1: i32) -> (i32, i32) {
    %c0_i32 = arith.constant 0 : i32
    return %arg1, %arg0 : i32, i32
  }
}

</mosaic_0001>

<llo_original>
// kernel: tpu_custom_call.1
$region0: #{tpu_custom_call.1}
  #allocation0 [shape = 'u32[]', space=smem, size = 0x4, offset = 0x4, fixed_abs, tag = 'smem constant byte address 0x4 - core index']
  #allocation1 [shape = 'u32[144,128]{1,0:T(1,128)}', space=vmem, size = 0x12000, scoped, tag = 'internal scratch']
  %s0 = inlined_call_operand.hbm [shape: f32[2,256], index: 0, kind: input, shape index: {}]
  %s1 = inlined_call_operand.vmem [shape: f32[1,256], index: 1, kind: input, shape index: {}]
  %s2 = inlined_call_operand.hbm [shape: f32[2,256], index: 2, kind: output, shape index: {}]
  %s3 = sld [smem:[#allocation0]]
  $region22: #{tpu_custom_call.1} parent=0
    _
  %s5 = ssub.s32 1, %s3
  %s6 = scalar_select 0, %s5, %s3
  $region1: #{tpu_custom_call.1} parent=0
    #allocation2 [shape = 'u8[2048]{0}', space=vmem, size = 0x800, scoped, tag = 'input window, operand 0, single buffered']
    #allocation3 [shape = 's32[1]{0}', space=sflag, size = 0x4, scoped, tag = 'scoped memory for tpu_custom_call.1']
    #allocation4 [shape = 's32[1]{0}', space=sflag, size = 0x4, scoped, tag = 'scoped memory for tpu_custom_call.1']
    #allocation5 [shape = 'u8[2048]{0}', space=vmem, size = 0x800, scoped, tag = 'output window, operand 0, single buffered']
    %7 = vsyncpa [#allocation3], 0
    %8 = vsyncpa [#allocation4], 0
    // Predicated region
    $region2: #{tpu_custom_call.1} parent=1 // pred_check
      _
    $region3: #{tpu_custom_call.1} parent=1 // pred_check_branch
      %10 = sbr.rel (0) target = $region5
    $region4: #{tpu_custom_call.1} parent=1 // pred_region
      %s12 = ssub.s32 64, 64
      %13 = vsyncadd [#allocation3], %s12
      %s15 = sshll.u32 [#allocation2], 4
      %s16 = int_to_ptr.vmem [resolvable:$true] %s15
      %18 = dma.hbm_to_vmem [thread:$0]  %s0, 64, %s16, [#allocation3]
    $region5: #{tpu_custom_call.1} parent=1 // pred_fallthru
      _
    // Predicated region
    $region6: #{tpu_custom_call.1} parent=1 // pred_check
      _
    $region7: #{tpu_custom_call.1} parent=1 // pred_check_branch
      %20 = sbr.rel (0) target = $region9
    $region8: #{tpu_custom_call.1} parent=1 // pred_region
      _
    $region9: #{tpu_custom_call.1} parent=1 // pred_fallthru
      _
    // Predicated region
    $region10: #{tpu_custom_call.1} parent=1 // pred_check
      _
    $region11: #{tpu_custom_call.1} parent=1 // pred_check_branch
      %22 = sbr.rel (0) target = $region13
    $region12: #{tpu_custom_call.1} parent=1 // pred_region
      %23 = dma.done [#allocation3], 64
    $region13: #{tpu_custom_call.1} parent=1 // pred_fallthru
      _
    %v24 = vld [vmem:[#allocation2] sm:$0xf]
    %v25 = vld [vmem:[%s1] sm:$0x3]
    %v27 = vlaneseq
    %v28 = vshrl.u32 %v27, 7
    %v29 = vsub.s32 0, %v28
    %v30 = vrot.slane %v25, %v29
    %v31 = vlaneseq
    %v32 = vshrl.u32 %v31, 7
    %v33 = vsub.s32 1, %v32
    %v34 = vrot.slane %v25, %v33
    %v35 = vcombine.low %v30, %v34
    %v37 = vunpack.c.l.s4 1983009808
    %v38 = vunpack.c.0.s8 %v37
    %v39 = vlaneseq
    %v40 = vshrl.u32 %v39, 7
    %v41 = vsub.s32 %v38, %v40
    %v42 = vrot.slane %v35, %v41
    %v44 = vadd.f32 %v24, %v42
    %45 = vst [vmem:[#allocation5] sm:$0xf] %v44
    // Predicated region
    $region14: #{tpu_custom_call.1} parent=1 // pred_check
      _
    $region15: #{tpu_custom_call.1} parent=1 // pred_check_branch
      %47 = sbr.rel (0) target = $region17
    $region16: #{tpu_custom_call.1} parent=1 // pred_region
      %s49 = ssub.s32 64, 64
      %50 = vsyncadd [#allocation4], %s49
      %s52 = sshll.u32 [#allocation5], 4
      %s53 = int_to_ptr.vmem [resolvable:$true] %s52
      %55 = dma.vmem_to_hbm [thread:$0]  %s53, 64, %s2, [#allocation4]
    $region17: #{tpu_custom_call.1} parent=1 // pred_fallthru
      _
    // Predicated region
    $region18: #{tpu_custom_call.1} parent=1 // pred_check
      _
    $region19: #{tpu_custom_call.1} parent=1 // pred_check_branch
      %57 = sbr.rel (0) target = $region21
    $region20: #{tpu_custom_call.1} parent=1 // pred_region
      %58 = dma.done [#allocation4], 64
    $region21: #{tpu_custom_call.1} parent=1 // pred_fallthru
      _
    %59 = vsyncpa [#allocation3], 1
    %60 = vsyncpa [#allocation4], 1

</llo_original>
